<compile_context>
chip_gen: v7x
topology: tpu7x:2x2x1
jax: 0.10.0
libtpu: 0.0.40
codegen_flags: <defaults>
</compile_context>

<pallas_src>
import jax
import jax.numpy as jnp
from jax.experimental import pallas as pl
from jax.experimental.pallas import tpu as pltpu


def _round_up(x: int, m: int) -> int:
    return ((x + m - 1) // m) * m


def _fc_kernel(x_ref, w1_ref, b1_ref, w2_ref, b2_ref, o_ref):
    # x_ref: (TB, In) f32 | w1_ref: (In, H_p) bf16 | b1_ref: (1, H_p) f32
    # w2_ref: (H_p, Out_p) bf16 | b2_ref: (1, Out_p) f32 | o_ref: (TB, Out_p) f32

    # Cast activations to bf16 in-kernel (hides under the input DMA), MXU matmul,
    # f32 accumulation.
    x = x_ref[...].astype(jnp.bfloat16)
    h = jnp.dot(x, w1_ref[...], preferred_element_type=jnp.float32)
    h = h + b1_ref[...]                          # f32 bias add (broadcast (1, H_p))

    # LeakyReLU (PyTorch default negative_slope = 0.01), f32 on the VPU
    # (v5e's VPU has no bf16, so f32 elementwise is the right choice everywhere).
    h = jnp.where(h >= 0, h, 0.01 * h)

    # Linear 2: bf16 operands on the MXU, f32 accumulation.
    y = jnp.dot(h.astype(jnp.bfloat16), w2_ref[...], preferred_element_type=jnp.float32)
    y = y + b2_ref[...]

    # Tanh on the EUP, f32 lane-dense store (Out_p is a multiple of 128).
    o_ref[...] = jnp.tanh(y)


def prepare_params(w1, b1, w2, b2):
    """Pad/cast weights once, outside the per-call path.

    Weight layout is (in_features, out_features), i.e. y = x @ W + b (equivalent to
    PyTorch's x @ W_pt.T + b).  Zero padding is exact: padded hidden columns get zero
    weights and zero bias -> LeakyReLU(0) = 0 -> multiply zero rows of w2; padded output
    columns give tanh(0) = 0 and are sliced off in the wrapper.
    """
    In, H = w1.shape
    Out = w2.shape[1]
    H_p = _round_up(H, 128)
    Out_p = _round_up(Out, 128)

    w1p = jnp.pad(w1.astype(jnp.bfloat16), ((0, 0), (0, H_p - H)))
    b1p = jnp.pad(b1.astype(jnp.float32).reshape(1, H), ((0, 0), (0, H_p - H)))
    w2p = jnp.pad(w2.astype(jnp.bfloat16), ((0, H_p - H), (0, Out_p - Out)))
    b2p = jnp.pad(b2.astype(jnp.float32).reshape(1, Out), ((0, 0), (0, Out_p - Out)))
    return w1p, b1p, w2p, b2p


def fc_model_forward(x, w1p, b1p, w2p, b2p, out_features, *, num_batch_tiles: int = 2):
    """x: (B, In) f32, padded params from prepare_params -> (B, out_features) f32."""
    B, In = x.shape
    H_p = w1p.shape[1]
    Out_p = w2p.shape[1]

    # Batch tile: a few balanced tiles (default 2), multiple of 8 sublanes.
    TB = _round_up(pl.cdiv(B, num_batch_tiles), 8)
    B_p = _round_up(B, TB)
    xp = x if B_p == B else jnp.pad(x, ((0, B_p - B), (0, 0)))
    grid = (B_p // TB,)

    out_padded = pl.pallas_call(
        _fc_kernel,
        out_shape=jax.ShapeDtypeStruct((B_p, Out_p), jnp.float32),
        grid_spec=pl.GridSpec(
            grid=grid,
            in_specs=[
                # Activation tile marches over batch (double-buffered by Pallas);
                # last dim == full array dim (In), so no K-dim padding is needed.
                pl.BlockSpec((TB, In), lambda i: (i, 0)),
                # Weights / biases: constant block index -> stay VMEM-resident.
                pl.BlockSpec((In, H_p), lambda i: (0, 0)),
                pl.BlockSpec((1, H_p), lambda i: (0, 0)),
                pl.BlockSpec((H_p, Out_p), lambda i: (0, 0)),
                pl.BlockSpec((1, Out_p), lambda i: (0, 0)),
            ],
            out_specs=pl.BlockSpec((TB, Out_p), lambda i: (i, 0)),
        ),
        compiler_params=pltpu.CompilerParams(
            # Independent batch tiles -> sharded across v7x's 2 TensorCores;
            # neutral on single-TC v5e/v6e.
            dimension_semantics=("parallel",),
        ),
    )(xp, w1p, b1p, w2p, b2p)

    out = out_padded[:, :out_features]
    if B_p != B:
        out = out[:B]
    return out


def _reference_f32(x, w1, b1, w2, b2):
    h = x @ w1 + b1
    h = jnp.where(h >= 0, h, 0.01 * h)
    y = h @ w2 + b2
    return jnp.tanh(y)


if __name__ == "__main__":
    # Small shapes consistent with FCModel(input_size=32, hidden_size=32, output_size=16).
    # batch=64 divides evenly into 2 tiles of 32 (no batch padding, balanced on v7x).
    batch, input_size, hidden_size, output_size = 64, 32, 32, 16

    key = jax.random.PRNGKey(0)
    kx, kw1, kb1, kw2, kb2 = jax.random.split(key, 5)

    x = jax.random.normal(kx, (batch, input_size), dtype=jnp.float32)

    # Deterministic init mimicking nn.Linear's uniform(-1/sqrt(fan_in), 1/sqrt(fan_in)).
    lim1 = 1.0 / (input_size ** 0.5)
    lim2 = 1.0 / (hidden_size ** 0.5)
    w1 = jax.random.uniform(kw1, (input_size, hidden_size), jnp.float32, -lim1, lim1)
    b1 = jax.random.uniform(kb1, (1, hidden_size), jnp.float32, -lim1, lim1)
    w2 = jax.random.uniform(kw2, (hidden_size, output_size), jnp.float32, -lim2, lim2)
    b2 = jax.random.uniform(kb2, (1, output_size), jnp.float32, -lim2, lim2)

    # Pad/cast weights once, reuse across calls.
    w1p, b1p, w2p, b2p = prepare_params(w1, b1, w2, b2)

    out = fc_model_forward(x, w1p, b1p, w2p, b2p, output_size, num_batch_tiles=2)
    out = jax.block_until_ready(out)

    ref = _reference_f32(x, w1, b1, w2, b2)
    assert out.shape == (batch, output_size)
    # Tolerance accounts for bf16 MXU operands (accumulation is f32, tanh bounds output).
    assert jnp.allclose(out, ref, atol=2e-2, rtol=2e-2), "mismatch vs reference"

    print("KERNEL_OK")
</pallas_src>

<mosaic_0001>
module attributes {stable_mosaic.version = 11 : i64} {
  func.func @_fc_kernel(%arg0: i32, %arg1: memref<32x32xf32, #tpu.memory_space<vmem>>, %arg2: memref<32x128xbf16, #tpu.memory_space<vmem>>, %arg3: memref<1x128xf32, #tpu.memory_space<vmem>>, %arg4: memref<128x128xbf16, #tpu.memory_space<vmem>>, %arg5: memref<1x128xf32, #tpu.memory_space<vmem>>, %arg6: memref<32x128xf32, #tpu.memory_space<vmem>>) attributes {dimension_semantics = [#tpu.dimension_semantics<parallel>], iteration_bounds = array<i64: 2>, scalar_prefetch = 0 : i64, scratch_operands = 0 : i64, tpu.core_type = #tpu.core_type<tc>, window_params = [{transform_indices = @transform_0, window_bounds = array<i64: 32, 32>}, {pipeline_mode = #tpu.pipeline_mode<synchronous>, transform_indices = @transform_1, window_bounds = array<i64: 32, 128>}, {pipeline_mode = #tpu.pipeline_mode<synchronous>, transform_indices = @transform_2, window_bounds = array<i64: 1, 128>}, {pipeline_mode = #tpu.pipeline_mode<synchronous>, transform_indices = @transform_3, window_bounds = array<i64: 128, 128>}, {pipeline_mode = #tpu.pipeline_mode<synchronous>, transform_indices = @transform_4, window_bounds = array<i64: 1, 128>}, {transform_indices = @transform_5, window_bounds = array<i64: 32, 128>}]} {
    %c0 = arith.constant 0 : index
    %c0_0 = arith.constant 0 : index
    %0 = vector.load %arg1[%c0, %c0_0] : memref<32x32xf32, #tpu.memory_space<vmem>>, vector<32x32xf32>
    %1 = arith.truncf %0 : vector<32x32xf32> to vector<32x32xbf16>
    %c0_1 = arith.constant 0 : index
    %c0_2 = arith.constant 0 : index
    %2 = vector.load %arg2[%c0_1, %c0_2] : memref<32x128xbf16, #tpu.memory_space<vmem>>, vector<32x128xbf16>
    %cst = arith.constant dense<0.000000e+00> : vector<32x128xf32>
    %3 = tpu.matmul %1, %2, %cst {dimension_numbers = #tpu.dot_dimension_numbers<[1], [0], [0], [1], [0, 0, 1, 1], [], []>} : vector<32x32xbf16>, vector<32x128xbf16>, vector<32x128xf32> -> vector<32x128xf32>
    %c0_3 = arith.constant 0 : index
    %c0_4 = arith.constant 0 : index
    %4 = vector.load %arg3[%c0_3, %c0_4] : memref<1x128xf32, #tpu.memory_space<vmem>>, vector<1x128xf32>
    %5 = vector.broadcast %4 : vector<1x128xf32> to vector<32x128xf32>
    %6 = arith.addf %3, %5 : vector<32x128xf32>
    %cst_5 = arith.constant 0.000000e+00 : f32
    %7 = vector.broadcast %cst_5 : f32 to vector<32x128xf32>
    %8 = arith.cmpf oge, %6, %7 : vector<32x128xf32>
    %cst_6 = arith.constant 0.00999999977 : f32
    %9 = vector.broadcast %cst_6 : f32 to vector<32x128xf32>
    %10 = arith.mulf %9, %6 : vector<32x128xf32>
    %11 = arith.select %8, %6, %10 : vector<32x128xi1>, vector<32x128xf32>
    %12 = arith.truncf %11 : vector<32x128xf32> to vector<32x128xbf16>
    %c0_7 = arith.constant 0 : index
    %c0_8 = arith.constant 0 : index
    %13 = vector.load %arg4[%c0_7, %c0_8] : memref<128x128xbf16, #tpu.memory_space<vmem>>, vector<128x128xbf16>
    %cst_9 = arith.constant dense<0.000000e+00> : vector<32x128xf32>
    %14 = tpu.matmul %12, %13, %cst_9 {dimension_numbers = #tpu.dot_dimension_numbers<[1], [0], [0], [1], [0, 0, 1, 1], [], []>} : vector<32x128xbf16>, vector<128x128xbf16>, vector<32x128xf32> -> vector<32x128xf32>
    %c0_10 = arith.constant 0 : index
    %c0_11 = arith.constant 0 : index
    %15 = vector.load %arg5[%c0_10, %c0_11] : memref<1x128xf32, #tpu.memory_space<vmem>>, vector<1x128xf32>
    %16 = vector.broadcast %15 : vector<1x128xf32> to vector<32x128xf32>
    %17 = arith.addf %14, %16 : vector<32x128xf32>
    %18 = math.tanh %17 : vector<32x128xf32>
    %c0_12 = arith.constant 0 : index
    %c0_13 = arith.constant 0 : index
    %19 = vector.load %arg6[%c0_12, %c0_13] : memref<32x128xf32, #tpu.memory_space<vmem>>, vector<32x128xf32>
    tpu.vector_store %arg6[%c0_12, %c0_13], %18 {strides = array<i32>} : memref<32x128xf32, #tpu.memory_space<vmem>>, vector<32x128xf32>,
    return
  }
  func.func @transform_0(%arg0: i32) -> (i32, i32) {
    %c0_i32 = arith.constant 0 : i32
    %c0_i32_0 = arith.constant 0 : i32
    return %arg0, %c0_i32 : i32, i32
  }
  func.func @transform_1(%arg0: i32) -> (i32, i32) {
    %c0_i32 = arith.constant 0 : i32
    %c0_i32_0 = arith.constant 0 : i32
    %c0_i32_1 = arith.constant 0 : i32
    return %c0_i32, %c0_i32_0 : i32, i32
  }
  func.func @transform_2(%arg0: i32) -> (i32, i32) {
    %c0_i32 = arith.constant 0 : i32
    %c0_i32_0 = arith.constant 0 : i32
    %c0_i32_1 = arith.constant 0 : i32
    return %c0_i32, %c0_i32_0 : i32, i32
  }
  func.func @transform_3(%arg0: i32) -> (i32, i32) {
    %c0_i32 = arith.constant 0 : i32
    %c0_i32_0 = arith.constant 0 : i32
    %c0_i32_1 = arith.constant 0 : i32
    return %c0_i32, %c0_i32_0 : i32, i32
  }
  func.func @transform_4(%arg0: i32) -> (i32, i32) {
    %c0_i32 = arith.constant 0 : i32
    %c0_i32_0 = arith.constant 0 : i32
    %c0_i32_1 = arith.constant 0 : i32
    return %c0_i32, %c0_i32_0 : i32, i32
  }
  func.func @transform_5(%arg0: i32) -> (i32, i32) {
    %c0_i32 = arith.constant 0 : i32
    %c0_i32_0 = arith.constant 0 : i32
    return %arg0, %c0_i32 : i32, i32
  }
}

</mosaic_0001>

<llo_original>
// kernel: tpu_custom_call.1
$region0: #{tpu_custom_call.1}
  #allocation0 [shape = 'u32[]', space=smem, size = 0x4, offset = 0x4, fixed_abs, tag = 'smem constant byte address 0x4 - core index']
  #allocation1 [shape = 'u32[144,128]{1,0:T(1,128)}', space=vmem, size = 0x12000, scoped, tag = 'internal scratch']
  %s0 = inlined_call_operand.vmem [shape: f32[64,32], index: 0, kind: input, shape index: {}]
  %s1 = inlined_call_operand.vmem [shape: bf16[32,128], index: 1, kind: input, shape index: {}]
  %s2 = inlined_call_operand.vmem [shape: f32[1,128], index: 2, kind: input, shape index: {}]
  %s3 = inlined_call_operand.vmem [shape: bf16[128,128], index: 3, kind: input, shape index: {}]
  %s4 = inlined_call_operand.vmem [shape: f32[1,128], index: 4, kind: input, shape index: {}]
  %s5 = inlined_call_operand.hbm [shape: f32[64,128], index: 5, kind: output, shape index: {}]
  %s6 = sld [smem:[#allocation0]]
  $region53: #{tpu_custom_call.1} parent=0
    _
  %s8 = ssub.s32 1, %s6
  %s9 = scalar_select 0, %s8, %s6
  $region1: #{tpu_custom_call.1} parent=0
    #allocation2 [shape = 'u8[32768]{0}', space=vmem, size = 0x8000, scoped, tag = 'output window, operand 0']
    #allocation3 [shape = 's32[2]{0}', space=sflag, size = 0x8, scoped, tag = 'scoped memory for tpu_custom_call.1']
    %10 = vsyncpa [#allocation3], 0
    %s11 = scalar_lea.sflag [#allocation3], 1
    %12 = vsyncpa %s11, 0
    loop: start=0, step=1, limit=4
    $region2: #{tpu_custom_call.1} parent=1 // loop_pre_header
      _
    $region3: #{tpu_custom_call.1} parent=1 // loop_header
      %s14 = sphi 0, %s18
      %p15 = scmp.ge.s32.totalorder %s14, 4
      %s24 = sphi 0, %s26
      %s27 = sphi 0, %s24
      %s28 = sphi 0, %s27
      %s44 = sphi 0, %s28
      %s48 = sphi 0, %s48
      %s50 = sphi 0, %s48
      %s51 = sphi 0, %s50
      %s65 = sphi 0, %s51
      %s69 = sphi 0, %s69
      %s71 = sphi 0, %s69
      %s72 = sphi 0, %s71
      %s86 = sphi 0, %s72
      %s90 = sphi 0, %s90
      %s92 = sphi 0, %s90
      %s93 = sphi 0, %s92
      %s107 = sphi 0, %s93
      %s111 = sphi 0, %s111
      %s113 = sphi 0, %s111
      %s114 = sphi 0, %s113
      %s128 = sphi 0, %s114
      %s134 = sphi 0, %s136
      %s137 = sphi 0, %s134
      %s138 = sphi 0, %s137
      %s154 = sphi 0, %s138
    $region4: #{tpu_custom_call.1} parent=1 // loop_header_branch
      %17 = sbr.rel (%p15) target = $region8
    $region5: #{tpu_custom_call.1} parent=1 // loop_body
      %s19 = ssub.s32 %s14, 1
      %s20 = ssub.s32 %s14, 2
      %s21 = sadd.s32 %s14, 1
      %s22 = ssub.s32 %s14, %s21
      %p23 = scmp.eq.s32.totalorder %s22, 0
      %s25 = sadd.s32 %s24, 1
      %s26 = scalar_select %p23, %s24, %s25
      %p29 = pneg %p23
      %p30 = scmp.eq.s32.totalorder %s14, 1
      %p31 = por %p29, %p30
      %p32 = scmp.ne.s32.totalorder %s24, %s27
      %p33 = scmp.eq.s32.totalorder %s14, 0
      %p34 = por %p32, %p33
      %p35 = scmp.ne.s32.totalorder %s24, %s27
      %p36 = scmp.eq.s32.totalorder %s19, 1
      %p37 = por %p35, %p36
      %p38 = scmp.ne.s32.totalorder %s27, %s28
      %p39 = scmp.eq.s32.totalorder %s19, 0
      %p40 = por %p38, %p39
      %p41 = scmp.ne.s32.totalorder %s27, %s28
      %p42 = scmp.eq.s32.totalorder %s20, 1
      %p43 = por %p41, %p42
      %p45 = scmp.ne.s32.totalorder %s28, %s44
      %p46 = scmp.eq.s32.totalorder %s20, 0
      %p47 = por %p45, %p46
      %s49 = sadd.s32 %s48, 1
      %p52 = scmp.eq.s32.totalorder %s14, 1
      %p53 = scmp.ne.s32.totalorder %s48, %s50
      %p54 = scmp.eq.s32.totalorder %s14, 0
      %p55 = por %p53, %p54
      %p56 = scmp.ne.s32.totalorder %s48, %s50
      %p57 = scmp.eq.s32.totalorder %s19, 1
      %p58 = por %p56, %p57
      %p59 = scmp.ne.s32.totalorder %s50, %s51
      %p60 = scmp.eq.s32.totalorder %s19, 0
      %p61 = por %p59, %p60
      %p62 = scmp.ne.s32.totalorder %s50, %s51
      %p63 = scmp.eq.s32.totalorder %s20, 1
      %p64 = por %p62, %p63
      %p66 = scmp.ne.s32.totalorder %s51, %s65
      %p67 = scmp.eq.s32.totalorder %s20, 0
      %p68 = por %p66, %p67
      %s70 = sadd.s32 %s69, 1
      %p73 = scmp.eq.s32.totalorder %s14, 1
      %p74 = scmp.ne.s32.totalorder %s69, %s71
      %p75 = scmp.eq.s32.totalorder %s14, 0
      %p76 = por %p74, %p75
      %p77 = scmp.ne.s32.totalorder %s69, %s71
      %p78 = scmp.eq.s32.totalorder %s19, 1
      %p79 = por %p77, %p78
      %p80 = scmp.ne.s32.totalorder %s71, %s72
      %p81 = scmp.eq.s32.totalorder %s19, 0
      %p82 = por %p80, %p81
      %p83 = scmp.ne.s32.totalorder %s71, %s72
      %p84 = scmp.eq.s32.totalorder %s20, 1
      %p85 = por %p83, %p84
      %p87 = scmp.ne.s32.totalorder %s72, %s86
      %p88 = scmp.eq.s32.totalorder %s20, 0
      %p89 = por %p87, %p88
      %s91 = sadd.s32 %s90, 1
      %p94 = scmp.eq.s32.totalorder %s14, 1
      %p95 = scmp.ne.s32.totalorder %s90, %s92
      %p96 = scmp.eq.s32.totalorder %s14, 0
      %p97 = por %p95, %p96
      %p98 = scmp.ne.s32.totalorder %s90, %s92
      %p99 = scmp.eq.s32.totalorder %s19, 1
      %p100 = por %p98, %p99
      %p101 = scmp.ne.s32.totalorder %s92, %s93
      %p102 = scmp.eq.s32.totalorder %s19, 0
      %p103 = por %p101, %p102
      %p104 = scmp.ne.s32.totalorder %s92, %s93
      %p105 = scmp.eq.s32.totalorder %s20, 1
      %p106 = por %p104, %p105
      %p108 = scmp.ne.s32.totalorder %s93, %s107
      %p109 = scmp.eq.s32.totalorder %s20, 0
      %p110 = por %p108, %p109
      %s112 = sadd.s32 %s111, 1
      %p115 = scmp.eq.s32.totalorder %s14, 1
      %p116 = scmp.ne.s32.totalorder %s111, %s113
      %p117 = scmp.eq.s32.totalorder %s14, 0
      %p118 = por %p116, %p117
      %p119 = scmp.ne.s32.totalorder %s111, %s113
      %p120 = scmp.eq.s32.totalorder %s19, 1
      %p121 = por %p119, %p120
      %p122 = scmp.ne.s32.totalorder %s113, %s114
      %p123 = scmp.eq.s32.totalorder %s19, 0
      %p124 = por %p122, %p123
      %p125 = scmp.ne.s32.totalorder %s113, %s114
      %p126 = scmp.eq.s32.totalorder %s20, 1
      %p127 = por %p125, %p126
      %p129 = scmp.ne.s32.totalorder %s114, %s128
      %p130 = scmp.eq.s32.totalorder %s20, 0
      %p131 = por %p129, %p130
      %s132 = ssub.s32 %s14, %s21
      %p133 = scmp.eq.s32.totalorder %s132, 0
      %s135 = sadd.s32 %s134, 1
      %s136 = scalar_select %p133, %s134, %s135
      %p139 = pneg %p133
      %p140 = scmp.eq.s32.totalorder %s14, 1
      %p141 = por %p139, %p140
      %p142 = scmp.ne.s32.totalorder %s134, %s137
      %p143 = scmp.eq.s32.totalorder %s14, 0
      %p144 = por %p142, %p143
      %p145 = scmp.ne.s32.totalorder %s134, %s137
      %p146 = scmp.eq.s32.totalorder %s19, 1
      %p147 = por %p145, %p146
      %p148 = scmp.ne.s32.totalorder %s137, %s138
      %p149 = scmp.eq.s32.totalorder %s19, 0
      %p150 = por %p148, %p149
      %p151 = scmp.ne.s32.totalorder %s137, %s138
      %p152 = scmp.eq.s32.totalorder %s20, 1
      %p153 = por %p151, %p152
      %p155 = scmp.ne.s32.totalorder %s138, %s154
      %p156 = scmp.eq.s32.totalorder %s20, 0
      %p157 = por %p155, %p156
      %p158 = scmp.le.s32.totalorder 1, %s14
      %p159 = scmp.lt.s32.totalorder %s14, 3
      %p160 = pnand %p158, %p159
      %p161 = pneg %p160
      // Predicated region
      $region9: #{tpu_custom_call.1} parent=5 // pred_check
        _
      $region10: #{tpu_custom_call.1} parent=5 // pred_check_branch
        %163 = sbr.rel (%p160) target = $region12
      $region11: #{tpu_custom_call.1} parent=5 // pred_region
        %s164 = ssub.s32 %s14, 1
        // Predicated region
        $region13: #{tpu_custom_call.1} parent=11 // pred_check
          %p165 = pneg %p61
        $region14: #{tpu_custom_call.1} parent=11 // pred_check_branch
          %167 = sbr.rel (%p165) target = $region16
        $region15: #{tpu_custom_call.1} parent=11 // pred_region
          _
        $region16: #{tpu_custom_call.1} parent=11 // pred_fallthru
          _
        // Predicated region
        $region17: #{tpu_custom_call.1} parent=11 // pred_check
          %p168 = pneg %p82
        $region18: #{tpu_custom_call.1} parent=11 // pred_check_branch
          %170 = sbr.rel (%p168) target = $region20
        $region19: #{tpu_custom_call.1} parent=11 // pred_region
          _
        $region20: #{tpu_custom_call.1} parent=11 // pred_fallthru
          _
        // Predicated region
        $region21: #{tpu_custom_call.1} parent=11 // pred_check
          %p171 = pneg %p103
        $region22: #{tpu_custom_call.1} parent=11 // pred_check_branch
          %173 = sbr.rel (%p171) target = $region24
        $region23: #{tpu_custom_call.1} parent=11 // pred_region
          _
        $region24: #{tpu_custom_call.1} parent=11 // pred_fallthru
          _
        // Predicated region
        $region25: #{tpu_custom_call.1} parent=11 // pred_check
          %p174 = pneg %p124
        $region26: #{tpu_custom_call.1} parent=11 // pred_check_branch
          %176 = sbr.rel (%p174) target = $region28
        $region27: #{tpu_custom_call.1} parent=11 // pred_region
          _
        $region28: #{tpu_custom_call.1} parent=11 // pred_fallthru
          _
      $region12: #{tpu_custom_call.1} parent=5 // pred_fallthru
        _
      %p177 = scmp.lt.s32.totalorder %s14, 2
      // Predicated region
      $region29: #{tpu_custom_call.1} parent=5 // pred_check
        %p178 = pneg %p177
      $region30: #{tpu_custom_call.1} parent=5 // pred_check_branch
        %180 = sbr.rel (%p178) target = $region32
      $region31: #{tpu_custom_call.1} parent=5 // pred_region
        // Predicated region
        $region33: #{tpu_custom_call.1} parent=31 // pred_check
          %p181 = pneg %p34
        $region34: #{tpu_custom_call.1} parent=31 // pred_check_branch
          %183 = sbr.rel (%p181) target = $region36
        $region35: #{tpu_custom_call.1} parent=31 // pred_region
          %s184 = smul.u32 4, %s14
          %p185 = scmp.lt.s32.totalorder %s184, 7
          %s186 = scalar_select %p185, %s184, 7
          %s187 = smul.addr %s186, 8
          %s188 = scalar_lea.vmem %s0, %s187
          %s189 = smul.u32 4, %s14
        $region36: #{tpu_custom_call.1} parent=31 // pred_fallthru
          _
      $region32: #{tpu_custom_call.1} parent=5 // pred_fallthru
        _
      %p190 = scmp.le.s32.totalorder 1, %s14
      %p191 = scmp.lt.s32.totalorder %s14, 3
      %p192 = pnand %p190, %p191
      %p193 = pneg %p192
      // Predicated region
      $region37: #{tpu_custom_call.1} parent=5 // pred_check
        _
      $region38: #{tpu_custom_call.1} parent=5 // pred_check_branch
        %195 = sbr.rel (%p192) target = $region40
      $region39: #{tpu_custom_call.1} parent=5 // pred_region
        %s196 = ssub.s32 %s14, 1
        %s197 = smul.u32 4, %s19
        %p198 = scmp.lt.s32.totalorder %s197, 7
        %s199 = scalar_select %p198, %s197, 7
        %s200 = smul.addr %s199, 8
        %s201 = scalar_lea.vmem %s0, %s200
        %p202 = pneg %p40
        %p203 = pneg %p37
        %p204 = pneg %p61
        %p205 = pneg %p58
        %p206 = pneg %p82
        %p207 = pneg %p79
        %p208 = pneg %p103
        %p209 = pneg %p100
        %p210 = pneg %p124
        %p211 = pneg %p121
        %p212 = pneg %p150
        %p213 = pneg %p147
        %s214 = sand.u32 %s137, 1
        %s215 = scalar_lea.sflag [#allocation3], %s214
        %s216 = sand.u32 %s137, 1
        %s217 = smul.addr %s216, 32
        %s218 = scalar_lea.vmem [#allocation2], %s217
        %s219 = smul.u32 4, %s19
        %p220 = scmp.lt.s32.totalorder %s219, 7
        %s221 = scalar_select %p220, %s219, 7
        %s222 = smul.addr %s221, 8
        %s223 = scalar_lea.vmem %s0, %s222
        %s224 = smul.u32 4, %s19
        %s225 = smul.u32 4, %s19
        %v227 = vld [vmem:[%s223] sm:$0xff]
        %v228 = vld [vmem:[%s223 + $0x8] sm:$0xff]
        %v229 = vld [vmem:[%s223 + $0x10] sm:$0xff]
        %v230 = vld [vmem:[%s223 + $0x18] sm:$0xff]
        %v231 = vpack.c.bf16 %v228, %v227
        %v232 = vpack.c.bf16 %v230, %v229
        %v233 = vld [vmem:[%s1] sm:$0xf]
        %v234 = vld [vmem:[%s1 + $0x4] sm:$0xf]
        %v235 = vld [vmem:[%s1 + $0x8] sm:$0xf]
        %v236 = vld [vmem:[%s1 + $0xc] sm:$0xf]
        %v237 = vld [vmem:[%s2] sm:$0x1]
        %v239 = vlaneseq
        %v240 = vshrl.u32 %v239, 7
        %v241 = vsub.s32 0, %v240
        %v242 = vrot.slane %v237, %v241
        %v248 = vunpack.c.l.b16 %v233
        %v249 = vunpack.c.l.b16 %v234
        %v250 = vunpack.c.l.b16 %v235
        %v251 = vunpack.c.l.b16 %v236
        %v252 = vpack.c.b16 %v249, %v248
        %v253 = vpack.c.b16 %v251, %v250
        %vm256 = vcmask 261120
        %v258 = vsel %vm256, %v231, 0
        %v261 = vsel %vm256, %v232, 0
        %263 = vmatprep.subr.bf16.mxu0 0
        %264 = vmatpush1.bf16.msra.mxu0 %v252
        %265 = vmatprep.subr.bf16.mxu0 0
        %266 = vmatpush1.bf16.msra.mxu0 %v253
        %267 = vmatprep.subr.bf16.mxu0 0
        %268 = vmatpush1.bf16.msra.mxu0 0
        %269 = vmatprep.subr.bf16.mxu0 0
        %270 = vmatpush1.bf16.msra.mxu0 0
        %271 = vmatprep.subr.bf16.mxu0 0
        %272 = vmatpush1.bf16.msra.mxu0 0
        %273 = vmatprep.subr.bf16.mxu0 0
        %274 = vmatpush1.bf16.msra.mxu0 0
        %275 = vmatprep.subr.bf16.mxu0 0
        %276 = vmatpush1.bf16.msra.mxu0 0
        %277 = vmatprep.subr.bf16.mxu0 0
        %278 = vmatpush1.bf16.msra.mxu0 0
        %279 = vmatprep.subr.bf16.mxu0 0
        %280 = vmatpush1.bf16.msra.mxu0 0
        %281 = vmatprep.subr.bf16.mxu0 0
        %282 = vmatpush1.bf16.msra.mxu0 0
        %283 = vmatprep.subr.bf16.mxu0 0
        %284 = vmatpush1.bf16.msra.mxu0 0
        %285 = vmatprep.subr.bf16.mxu0 0
        %286 = vmatpush1.bf16.msra.mxu0 0
        %287 = vmatprep.subr.bf16.mxu0 0
        %288 = vmatpush1.bf16.msra.mxu0 0
        %289 = vmatprep.subr.bf16.mxu0 0
        %290 = vmatpush1.bf16.msra.mxu0 0
        %291 = vmatprep.subr.bf16.mxu0 0
        %292 = vmatpush1.bf16.msra.mxu0 0
        %293 = vmatprep.subr.bf16.mxu0 0
        %294 = vmatpush1.bf16.msra.mxu0 0
        %295 = vmatprep.mubr.bf16.mxu0 0
        %296 = vmatmul.mubr.bf16.gmra.mrb[0].mxu0 %v258
        %v297 = vpop.f32.mrb[0].mxu0
        %v298 = vadd.f32 %v242, %v297
        %v299 = vpop.f32.mrb[0].mxu0
        %v300 = vpop.f32.mrb[0].mxu0
        %v301 = vadd.f32 %v242, %v300
        %v302 = vpop.f32.mrb[0].mxu0
        %303 = vmatprep.mubr.bf16.mxu0 0
        %304 = vmatmul.mubr.bf16.gmra.mrb[0].mxu0 %v261
        %v305 = vpop.f32.mrb[0].mxu0
        %v306 = vadd.f32 %v242, %v305
        %v307 = vpop.f32.mrb[0].mxu0
        %v308 = vpop.f32.mrb[0].mxu0
        %v309 = vadd.f32 %v242, %v308
        %v310 = vpop.f32.mrb[0].mxu0
        %311 = vdwg.mxu0
        %vm312 = vcmp.ge.f32.partialorder %v298, 0.0
        %vm313 = vcmp.ge.f32.partialorder %v301, 0.0
        %vm314 = vcmp.ge.f32.partialorder %v306, 0.0
        %vm315 = vcmp.ge.f32.partialorder %v309, 0.0
        %v316 = vmul.f32 %v298, 0.01
        %v317 = vmul.f32 %v301, 0.01
        %v318 = vmul.f32 %v306, 0.01
        %v319 = vmul.f32 %v309, 0.01
        %v320 = vsel %vm312, %v298, %v316
        %v321 = vsel %vm313, %v301, %v317
        %v322 = vsel %vm314, %v306, %v318
        %v323 = vsel %vm315, %v309, %v319
        %v324 = vpack.c.bf16 %v321, %v320
        %v325 = vpack.c.bf16 %v323, %v322
        %v326 = vld [vmem:[%s3] sm:$0xf]
        %v327 = vld [vmem:[%s3 + $0x4] sm:$0xf]
        %v328 = vld [vmem:[%s3 + $0x8] sm:$0xf]
        %v329 = vld [vmem:[%s3 + $0xc] sm:$0xf]
        %v330 = vld [vmem:[%s3 + $0x10] sm:$0xf]
        %v331 = vld [vmem:[%s3 + $0x14] sm:$0xf]
        %v332 = vld [vmem:[%s3 + $0x18] sm:$0xf]
        %v333 = vld [vmem:[%s3 + $0x1c] sm:$0xf]
        %v334 = vld [vmem:[%s3 + $0x20] sm:$0xf]
        %v335 = vld [vmem:[%s3 + $0x24] sm:$0xf]
        %v336 = vld [vmem:[%s3 + $0x28] sm:$0xf]
        %v337 = vld [vmem:[%s3 + $0x2c] sm:$0xf]
        %v338 = vld [vmem:[%s3 + $0x30] sm:$0xf]
        %v339 = vld [vmem:[%s3 + $0x34] sm:$0xf]
        %v340 = vld [vmem:[%s3 + $0x38] sm:$0xf]
        %v341 = vld [vmem:[%s3 + $0x3c] sm:$0xf]
        %v342 = vld [vmem:[%s4] sm:$0x1]
        %v344 = vlaneseq
        %v345 = vshrl.u32 %v344, 7
        %v346 = vsub.s32 0, %v345
        %v347 = vrot.slane %v342, %v346
        %v365 = vunpack.c.l.b16 %v326
        %v366 = vunpack.c.l.b16 %v327
        %v367 = vunpack.c.l.b16 %v328
        %v368 = vunpack.c.l.b16 %v329
        %v369 = vunpack.c.l.b16 %v330
        %v370 = vunpack.c.l.b16 %v331
        %v371 = vunpack.c.l.b16 %v332
        %v372 = vunpack.c.l.b16 %v333
        %v373 = vunpack.c.l.b16 %v334
        %v374 = vunpack.c.l.b16 %v335
        %v375 = vunpack.c.l.b16 %v336
        %v376 = vunpack.c.l.b16 %v337
        %v377 = vunpack.c.l.b16 %v338
        %v378 = vunpack.c.l.b16 %v339
        %v379 = vunpack.c.l.b16 %v340
        %v380 = vunpack.c.l.b16 %v341
        %v381 = vpack.c.b16 %v366, %v365
        %v382 = vpack.c.b16 %v368, %v367
        %v383 = vpack.c.b16 %v370, %v369
        %v384 = vpack.c.b16 %v372, %v371
        %v385 = vpack.c.b16 %v374, %v373
        %v386 = vpack.c.b16 %v376, %v375
        %v387 = vpack.c.b16 %v378, %v377
        %v388 = vpack.c.b16 %v380, %v379
        %397 = vmatprep.subr.bf16.mxu0 0
        %398 = vmatpush1.bf16.msra.mxu0 %v381
        %399 = vmatprep.subr.bf16.mxu0 0
        %400 = vmatpush1.bf16.msra.mxu0 %v382
        %401 = vmatprep.subr.bf16.mxu0 0
        %402 = vmatpush1.bf16.msra.mxu0 %v383
        %403 = vmatprep.subr.bf16.mxu0 0
        %404 = vmatpush1.bf16.msra.mxu0 %v384
        %405 = vmatprep.subr.bf16.mxu0 0
        %406 = vmatpush1.bf16.msra.mxu0 %v385
        %407 = vmatprep.subr.bf16.mxu0 0
        %408 = vmatpush1.bf16.msra.mxu0 %v386
        %409 = vmatprep.subr.bf16.mxu0 0
        %410 = vmatpush1.bf16.msra.mxu0 %v387
        %411 = vmatprep.subr.bf16.mxu0 0
        %412 = vmatpush1.bf16.msra.mxu0 %v388
        %413 = vmatprep.subr.bf16.mxu0 0
        %414 = vmatpush1.bf16.msra.mxu0 0
        %415 = vmatprep.subr.bf16.mxu0 0
        %416 = vmatpush1.bf16.msra.mxu0 0
        %417 = vmatprep.subr.bf16.mxu0 0
        %418 = vmatpush1.bf16.msra.mxu0 0
        %419 = vmatprep.subr.bf16.mxu0 0
        %420 = vmatpush1.bf16.msra.mxu0 0
        %421 = vmatprep.subr.bf16.mxu0 0
        %422 = vmatpush1.bf16.msra.mxu0 0
        %423 = vmatprep.subr.bf16.mxu0 0
        %424 = vmatpush1.bf16.msra.mxu0 0
        %425 = vmatprep.subr.bf16.mxu0 0
        %426 = vmatpush1.bf16.msra.mxu0 0
        %427 = vmatprep.subr.bf16.mxu0 0
        %428 = vmatpush1.bf16.msra.mxu0 0
        %429 = vmatprep.mubr.bf16.mxu0 0
        %430 = vmatmul.mubr.bf16.gmra.mrb[0].mxu0 %v324
        %v431 = vpop.f32.mrb[0].mxu0
        %v432 = vadd.f32 %v347, %v431
        %v433 = vpop.f32.mrb[0].mxu0
        %v434 = vpop.f32.mrb[0].mxu0
        %v435 = vadd.f32 %v347, %v434
        %v436 = vpop.f32.mrb[0].mxu0
        %437 = vmatprep.mubr.bf16.mxu0 0
        %438 = vmatmul.mubr.bf16.gmra.mrb[0].mxu0 %v325
        %v439 = vpop.f32.mrb[0].mxu0
        %v440 = vadd.f32 %v347, %v439
        %v441 = vpop.f32.mrb[0].mxu0
        %v442 = vpop.f32.mrb[0].mxu0
        %v443 = vadd.f32 %v347, %v442
        %v444 = vpop.f32.mrb[0].mxu0
        %445 = vdwg.mxu0
        %v446 = vtanh.pop %v432
        %v447 = vtanh.pop %v435
        %v448 = vtanh.pop %v440
        %v449 = vtanh.pop %v443
        %450 = vst [vmem:[%s218] sm:$0xff] %v446
        %451 = vst [vmem:[%s218 + $0x8] sm:$0xff] %v447
        %452 = vst [vmem:[%s218 + $0x10] sm:$0xff] %v448
        %453 = vst [vmem:[%s218 + $0x18] sm:$0xff] %v449
        %s454 = sand.u32 %s137, 1
        %s455 = scalar_lea.sflag [#allocation3], %s454
        %s456 = sand.u32 %s137, 1
        %s457 = smul.addr %s456, 32
        %s458 = scalar_lea.vmem [#allocation2], %s457
        // Predicated region
        $region41: #{tpu_custom_call.1} parent=39 // pred_check
          %p459 = pneg %p147
        $region42: #{tpu_custom_call.1} parent=39 // pred_check_branch
          %461 = sbr.rel (%p459) target = $region44
        $region43: #{tpu_custom_call.1} parent=39 // pred_region
          %s462 = smul.u32 4, %s19
          %s464 = ssub.s32 512, 512
          %465 = vsyncadd %s455, %s464
          %s466 = smul.addr %s462, 128
          %s467 = scalar_lea.hbm %s5, %s466
          %s468 = sshll.u32 %s458, 4
          %s469 = int_to_ptr.vmem [resolvable:$true] %s468
          %474 = dma.vmem_to_hbm [thread:$0]  %s469, 512, %s467, %s455, 128, 128, 8
        $region44: #{tpu_custom_call.1} parent=39 // pred_fallthru
          _
      $region40: #{tpu_custom_call.1} parent=5 // pred_fallthru
        _
      %p475 = scmp.le.s32.totalorder 2, %s14
      // Predicated region
      $region45: #{tpu_custom_call.1} parent=5 // pred_check
        %p476 = pneg %p475
      $region46: #{tpu_custom_call.1} parent=5 // pred_check_branch
        %478 = sbr.rel (%p476) target = $region48
      $region47: #{tpu_custom_call.1} parent=5 // pred_region
        %s479 = ssub.s32 %s14, 2
        // Predicated region
        $region49: #{tpu_custom_call.1} parent=47 // pred_check
          %p480 = pneg %p153
        $region50: #{tpu_custom_call.1} parent=47 // pred_check_branch
          %482 = sbr.rel (%p480) target = $region52
        $region51: #{tpu_custom_call.1} parent=47 // pred_region
          %s483 = sand.u32 %s138, 1
          %s484 = scalar_lea.sflag [#allocation3], %s483
          %s485 = sand.u32 %s138, 1
          %s486 = smul.addr %s485, 32
          %s487 = scalar_lea.vmem [#allocation2], %s486
          %488 = dma.done %s484, 512
        $region52: #{tpu_custom_call.1} parent=47 // pred_fallthru
          _
      $region48: #{tpu_custom_call.1} parent=5 // pred_fallthru
        _
    $region6: #{tpu_custom_call.1} parent=1 // loop_footer
      %s18 = sadd.s32 1, %s14
    $region7: #{tpu_custom_call.1} parent=1 // loop_footer_branch
      %13 = sbr.rel target = $region3
    $region8: #{tpu_custom_call.1} parent=1 // loop_exit
      _
    %489 = vsyncpa [#allocation3], 1
    %s490 = scalar_lea.sflag [#allocation3], 1
    %491 = vsyncpa %s490, 1

</llo_original>
